<compile_context>
chip_gen: v7x
topology: tpu7x:2x2x1
jax: 0.10.0
libtpu: 0.0.40
codegen_flags: <defaults>
</compile_context>

<pallas_src>
import functools

import jax
import jax.numpy as jnp
from jax.experimental import pallas as pl
from jax.experimental.pallas import tpu as pltpu


# ----------------------------------------------------------------------------
# shared in-kernel 3x3 conv core (bf16 MXU, f32 accumulate + epilogue)
# ----------------------------------------------------------------------------
def _conv3x3_core(xp, w, b, act):
    """xp: (H+2, W+2, Cin) bf16 zero-padded; w: (3, 3*Cin, Cout) bf16; b: (1, Cout) f32."""
    Hp, Wp, cin = xp.shape
    H, W = Hp - 2, Wp - 2
    cout = w.shape[-1]
    acc = jnp.zeros((H * W, cout), jnp.float32)
    for dy in range(3):                                   # 3 matmuls, K = 3*Cin
        slab = xp[dy:dy + H]                              # (H, W+2, Cin)
        win = jnp.concatenate(
            [slab[:, 0:W], slab[:, 1:W + 1], slab[:, 2:W + 2]], axis=-1)
        acc = acc + jnp.dot(win.reshape(H * W, 3 * cin), w[dy],
                            preferred_element_type=jnp.float32)
    acc = acc + b                                         # f32 epilogue
    if act == "lrelu":
        acc = jnp.where(acc >= 0, acc, 0.2 * acc)
    elif act == "relu":
        acc = jnp.maximum(acc, 0.0)
    return acc.reshape(H, W, cout)


# ----------------------------------------------------------------------------
# fused RRDB kernel: 3 residual dense blocks (15 convs) in a single pallas_call
# ----------------------------------------------------------------------------
def _rrdb_kernel(x_ref, w1, w2, w3, w4, w5, b1, b2, b3, b4, b5,
                 o_ref, buf, cur, *, H, W, nf, gc):
    w_refs = (w1, w2, w3, w4, w5)
    b_refs = (b1, b2, b3, b4, b5)
    cins = (nf, nf + gc, nf + 2 * gc, nf + 3 * gc, nf + 4 * gc)

    buf[...] = jnp.zeros_like(buf)          # zero halo ring + concat workspace
    cur[...] = x_ref[0]                     # f32 residual carrier (VMEM scratch)

    for r in range(3):                      # RDB1..RDB3 (static unroll)
        buf[1:H + 1, 1:W + 1, 0:nf] = cur[...].astype(jnp.bfloat16)
        for k in range(4):                  # conv1..conv4 (+ LeakyReLU 0.2)
            y = _conv3x3_core(buf[:, :, 0:cins[k]],
                              w_refs[k][r], b_refs[k][r], act="lrelu")
            c0 = nf + k * gc
            buf[1:H + 1, 1:W + 1, c0:c0 + gc] = y.astype(jnp.bfloat16)
        y5 = _conv3x3_core(buf[:, :, 0:cins[4]], w5[r], b5[r], act=None)
        cur[...] = y5 * 0.2 + cur[...]      # RDB residual

    o_ref[0] = (cur[...] * 0.2 + x_ref[0]).astype(o_ref.dtype)   # RRDB residual


def _const_index_map(*grid_idx, nd):
    return (0,) * nd


@jax.jit
def rrdb_block(x, p):
    """x: (N, H, W, nf) f32; p['w'][k]: (3, 3, 3*Cin_k, Cout_k) bf16, p['b'][k]: (3,1,Cout_k) f32."""
    N, H, W, nf = x.shape
    gc = p["w"][0].shape[-1]
    ctot = nf + 4 * gc
    args = tuple(p["w"]) + tuple(p["b"])
    in_specs = [pl.BlockSpec((1, H, W, nf), lambda n: (n, 0, 0, 0))]
    in_specs += [pl.BlockSpec(a.shape, functools.partial(_const_index_map, nd=a.ndim))
                 for a in args]                 # weights resident in VMEM across grid
    kernel = functools.partial(_rrdb_kernel, H=H, W=W, nf=nf, gc=gc)
    return pl.pallas_call(
        kernel,
        out_shape=jax.ShapeDtypeStruct((N, H, W, nf), jnp.float32),
        grid=(N,),
        in_specs=in_specs,
        out_specs=pl.BlockSpec((1, H, W, nf), lambda n: (n, 0, 0, 0)),
        scratch_shapes=[pltpu.VMEM((H + 2, W + 2, ctot), jnp.bfloat16),
                        pltpu.VMEM((H, W, nf), jnp.float32)],
        compiler_params=pltpu.CompilerParams(
            dimension_semantics=("parallel",),
            vmem_limit_bytes=48 * 1024 * 1024),
    )(x, *args)


# ----------------------------------------------------------------------------
# standalone conv kernel (optional fused nearest-2x upsample / 2x2 max-pool)
# ----------------------------------------------------------------------------
def _conv3x3_kernel(x_ref, w_ref, b_ref, o_ref, xp_buf, *, act, upsample, pool):
    x = x_ref[0]                                          # (H, W, Cin) f32
    if upsample:                                          # fused F.interpolate(x2, nearest)
        x = jnp.repeat(jnp.repeat(x, 2, axis=0), 2, axis=1)
    Hc, Wc, _ = x.shape
    xp_buf[...] = jnp.zeros_like(xp_buf)                  # in-kernel zero halo
    xp_buf[1:Hc + 1, 1:Wc + 1, :] = x.astype(jnp.bfloat16)
    y = _conv3x3_core(xp_buf[...], w_ref[...], b_ref[...], act)
    if pool:                                              # fused MaxPool2d(2, 2)
        cout = y.shape[-1]
        y = y.reshape(Hc // 2, 2, Wc // 2, 2, cout)
        y = jnp.maximum(y[:, 0], y[:, 1])
        y = jnp.maximum(y[:, :, 0], y[:, :, 1])
    o_ref[0] = y.astype(o_ref.dtype)


@functools.partial(jax.jit, static_argnames=("act", "upsample", "pool"))
def conv3x3(x, w, b, act=None, upsample=False, pool=False):
    """x: (N,H,W,Cin) f32, w: (3,3*Cin,Cout) bf16, b: (1,Cout) f32."""
    N, H, W, Cin = x.shape
    Cout = w.shape[-1]
    Hc, Wc = (2 * H, 2 * W) if upsample else (H, W)       # conv resolution
    Ho, Wo = (Hc // 2, Wc // 2) if pool else (Hc, Wc)     # output resolution
    kernel = functools.partial(_conv3x3_kernel, act=act, upsample=upsample, pool=pool)
    return pl.pallas_call(
        kernel,
        out_shape=jax.ShapeDtypeStruct((N, Ho, Wo, Cout), jnp.float32),
        grid=(N,),
        in_specs=[
            pl.BlockSpec((1, H, W, Cin), lambda n: (n, 0, 0, 0)),
            pl.BlockSpec((3, 3 * Cin, Cout), lambda n: (0, 0, 0)),
            pl.BlockSpec((1, Cout), lambda n: (0, 0)),
        ],
        out_specs=pl.BlockSpec((1, Ho, Wo, Cout), lambda n: (n, 0, 0, 0)),
        scratch_shapes=[pltpu.VMEM((Hc + 2, Wc + 2, Cin), jnp.bfloat16)],
        compiler_params=pltpu.CompilerParams(
            dimension_semantics=("parallel",),
            vmem_limit_bytes=48 * 1024 * 1024),
    )(x, w, b)


# ----------------------------------------------------------------------------
# Parameter initialization (deterministic, synthetic weights)
# ----------------------------------------------------------------------------
def init_conv(key, cin, cout, scale=0.1):
    std = scale * (2.0 / (9 * cin)) ** 0.5
    w = (jax.random.normal(key, (3, 3 * cin, cout), jnp.float32) * std).astype(jnp.bfloat16)
    b = jnp.zeros((1, cout), jnp.float32)
    return {"w": w, "b": b}


def init_rrdb(key, nf, gc):
    cins = (nf, nf + gc, nf + 2 * gc, nf + 3 * gc, nf + 4 * gc)
    couts = (gc, gc, gc, gc, nf)
    keys = jax.random.split(key, 15)
    ws, bs = [], []
    for k in range(5):
        std = 0.1 * (2.0 / (9 * cins[k])) ** 0.5
        w = jnp.stack([jax.random.normal(keys[3 * k + r],
                                         (3, 3 * cins[k], couts[k]), jnp.float32) * std
                       for r in range(3)])                 # (3 RDBs, 3, 3*Cin, Cout)
        ws.append(w.astype(jnp.bfloat16))
        bs.append(jnp.zeros((3, 1, couts[k]), jnp.float32))
    return {"w": tuple(ws), "b": tuple(bs)}


def init_rrdbnet(key, in_nc, out_nc, nf, nb, gc):
    keys = jax.random.split(key, nb + 6)
    return {
        "conv_first": init_conv(keys[0], in_nc, nf),
        "trunk1": [init_rrdb(keys[1 + i], nf, gc) for i in range(10)],
        "trunk2": [init_rrdb(keys[11 + i], nf, gc) for i in range(nb - 10)],
        "trunk_conv": init_conv(keys[nb + 1], nf, nf),
        "upconv1": init_conv(keys[nb + 2], nf, nf),
        "upconv2": init_conv(keys[nb + 3], nf, nf),
        "HRconv": init_conv(keys[nb + 4], nf, nf),
        "conv_last": init_conv(keys[nb + 5], nf, out_nc),
    }


def init_vgg_encoder(key):
    # vgg19.features[:10]: 3->64, 64->64, [pool], 64->128, 128->128, [pool]
    ks = jax.random.split(key, 4)
    return [init_conv(ks[0], 3, 64, 1.0), init_conv(ks[1], 64, 64, 1.0),
            init_conv(ks[2], 64, 128, 1.0), init_conv(ks[3], 128, 128, 1.0)]


def init_fan_standin(key):
    ks = jax.random.split(key, 2)
    return {"c1": init_conv(ks[0], 3, 64, 1.0), "c2": init_conv(ks[1], 64, 68, 1.0)}


def init_errdbnet(key, in_nc, out_nc, nf, nb, gc):
    kc, ke, kf, kfine = jax.random.split(key, 4)
    return {
        "coarse": init_rrdbnet(kc, in_nc, out_nc, nf, nb, gc),
        "encoder": init_vgg_encoder(ke),
        "fan": init_fan_standin(kf),
        "fine": init_rrdbnet(kfine, 196, out_nc, nf, nb, gc),  # 128 (vgg) + 68 (fan)
    }


# ----------------------------------------------------------------------------
# Forward passes
# ----------------------------------------------------------------------------
def rrdbnet_forward(p, x):
    fea = conv3x3(x, p["conv_first"]["w"], p["conv_first"]["b"], act=None)
    t = fea
    for rp in p["trunk1"]:
        t = rrdb_block(t, rp)
    fea = conv3x3(t, p["trunk_conv"]["w"], p["trunk_conv"]["b"], act=None)
    fea = conv3x3(fea, p["upconv1"]["w"], p["upconv1"]["b"], act="lrelu", upsample=True)
    t = fea
    for rp in p["trunk2"]:
        t = rrdb_block(t, rp)
    # trunk_conv is applied a second time with shared weights (matches the reference forward)
    fea = conv3x3(t, p["trunk_conv"]["w"], p["trunk_conv"]["b"], act=None)
    fea = conv3x3(fea, p["upconv2"]["w"], p["upconv2"]["b"], act="lrelu", upsample=True)
    fea = conv3x3(fea, p["HRconv"]["w"], p["HRconv"]["b"], act="lrelu")
    fea = conv3x3(fea, p["conv_last"]["w"], p["conv_last"]["b"], act=None)
    return fea


def vgg_encoder_forward(p, x):
    # vgg19.features[:10]: conv/relu, conv/relu, pool, conv/relu, conv/relu, pool
    x = conv3x3(x, p[0]["w"], p[0]["b"], act="relu")
    x = conv3x3(x, p[1]["w"], p[1]["b"], act="relu", pool=True)
    x = conv3x3(x, p[2]["w"], p[2]["b"], act="relu")
    x = conv3x3(x, p[3]["w"], p[3]["b"], act="relu", pool=True)
    return x                                               # (N, H/4, W/4, 128)


def fan_forward(p, x):
    # TODO(synk): true 2DFAN4 hourglass + pretrained weights (load_url) have no
    # in-script equivalent; stand-in preserves the output contract:
    # 68-channel heatmaps at (H/4, W/4).
    xd = x[:, ::4, ::4, :]
    h = conv3x3(xd, p["c1"]["w"], p["c1"]["b"], act="relu")
    h = conv3x3(h, p["c2"]["w"], p["c2"]["b"], act=None)
    return h                                               # (N, H/4, W/4, 68)


def errdbnet_forward(p, x):
    x = rrdbnet_forward(p["coarse"], x)                    # 4x super-resolved image
    enc = vgg_encoder_forward(p["encoder"], x)             # (N, H/4, W/4, 128)
    fan = fan_forward(p["fan"], x)                         # (N, H/4, W/4, 68)
    y = jnp.concatenate([enc, fan], axis=-1)               # 196 channels
    y = rrdbnet_forward(p["fine"], y)
    return x, fan, y


# ----------------------------------------------------------------------------
if __name__ == "__main__":
    key = jax.random.PRNGKey(0)
    pkey, xkey = jax.random.split(key)

    # Small but structurally faithful config (trunk1 fixed at 10 RRDBs, trunk2 = nb-10).
    in_nc, out_nc, nf, nb, gc = 3, 3, 16, 11, 8
    params = init_errdbnet(pkey, in_nc, out_nc, nf, nb, gc)

    N, H, W = 2, 8, 8                                      # batch 2 -> megacore-friendly grid
    x = jax.random.normal(xkey, (N, H, W, in_nc), jnp.float32)

    x_coarse, fan, y = errdbnet_forward(params, x)
    jax.block_until_ready((x_coarse, fan, y))

    assert x_coarse.shape == (N, 4 * H, 4 * W, out_nc)
    assert fan.shape == (N, H, W, 68)
    assert y.shape == (N, 4 * H, 4 * W, out_nc)
    print("KERNEL_OK")
</pallas_src>

<mosaic_0001>
module attributes {stable_mosaic.version = 11 : i64} {
  func.func @_conv3x3_kernel(%arg0: i32, %arg1: memref<1x8x8x3xf32, #tpu.memory_space<vmem>>, %arg2: memref<3x9x16xbf16, #tpu.memory_space<vmem>>, %arg3: memref<1x16xf32, #tpu.memory_space<vmem>>, %arg4: memref<1x8x8x16xf32, #tpu.memory_space<vmem>>, %arg5: memref<10x10x3xbf16, #tpu.memory_space<vmem>>) attributes {dimension_semantics = [#tpu.dimension_semantics<parallel>], iteration_bounds = array<i64: 2>, scalar_prefetch = 0 : i64, scratch_operands = 1 : i64, tpu.core_type = #tpu.core_type<tc>, window_params = [{transform_indices = @transform_0, window_bounds = array<i64: 1, 8, 8, 3>}, {pipeline_mode = #tpu.pipeline_mode<synchronous>, transform_indices = @transform_1, window_bounds = array<i64: 3, 9, 16>}, {pipeline_mode = #tpu.pipeline_mode<synchronous>, transform_indices = @transform_2, window_bounds = array<i64: 1, 16>}, {transform_indices = @transform_3, window_bounds = array<i64: 1, 8, 8, 16>}]} {
    %c0 = arith.constant 0 : index
    %c0_0 = arith.constant 0 : index
    %c0_1 = arith.constant 0 : index
    %c0_2 = arith.constant 0 : index
    %0 = vector.load %arg1[%c0, %c0_0, %c0_1, %c0_2] : memref<1x8x8x3xf32, #tpu.memory_space<vmem>>, vector<1x8x8x3xf32>
    %1 = vector.shape_cast %0 : vector<1x8x8x3xf32> to vector<8x8x3xf32>
    %cst = arith.constant 0.000000e+00 : bf16
    %2 = vector.broadcast %cst : bf16 to vector<10x10x3xbf16>
    %c0_3 = arith.constant 0 : index
    %c0_4 = arith.constant 0 : index
    %c0_5 = arith.constant 0 : index
    %3 = vector.load %arg5[%c0_3, %c0_4, %c0_5] : memref<10x10x3xbf16, #tpu.memory_space<vmem>>, vector<10x10x3xbf16>
    tpu.vector_store %arg5[%c0_3, %c0_4, %c0_5], %2 {strides = array<i32>} : memref<10x10x3xbf16, #tpu.memory_space<vmem>>, vector<10x10x3xbf16>,
    %4 = arith.truncf %1 : vector<8x8x3xf32> to vector<8x8x3xbf16>
    %c1 = arith.constant 1 : index
    %c1_6 = arith.constant 1 : index
    %c0_7 = arith.constant 0 : index
    %5 = vector.load %arg5[%c1, %c1_6, %c0_7] : memref<10x10x3xbf16, #tpu.memory_space<vmem>>, vector<8x8x3xbf16>
    tpu.vector_store %arg5[%c1, %c1_6, %c0_7], %4 {strides = array<i32>} : memref<10x10x3xbf16, #tpu.memory_space<vmem>>, vector<8x8x3xbf16>,
    %c0_8 = arith.constant 0 : index
    %c0_9 = arith.constant 0 : index
    %c0_10 = arith.constant 0 : index
    %6 = vector.load %arg5[%c0_8, %c0_9, %c0_10] : memref<10x10x3xbf16, #tpu.memory_space<vmem>>, vector<10x10x3xbf16>
    %c0_11 = arith.constant 0 : index
    %c0_12 = arith.constant 0 : index
    %c0_13 = arith.constant 0 : index
    %7 = vector.load %arg2[%c0_11, %c0_12, %c0_13] : memref<3x9x16xbf16, #tpu.memory_space<vmem>>, vector<3x9x16xbf16>
    %c0_14 = arith.constant 0 : index
    %c0_15 = arith.constant 0 : index
    %8 = vector.load %arg3[%c0_14, %c0_15] : memref<1x16xf32, #tpu.memory_space<vmem>>, vector<1x16xf32>
    %cst_16 = arith.constant 0.000000e+00 : f32
    %9 = vector.broadcast %cst_16 : f32 to vector<64x16xf32>
    %10 = vector.extract_strided_slice %6 {offsets = [0, 0, 0], sizes = [8, 10, 3], strides = [1, 1, 1]} : vector<10x10x3xbf16> to vector<8x10x3xbf16>
    %11 = vector.extract_strided_slice %10 {offsets = [0, 0, 0], sizes = [8, 8, 3], strides = [1, 1, 1]} : vector<8x10x3xbf16> to vector<8x8x3xbf16>
    %12 = vector.extract_strided_slice %10 {offsets = [0, 1, 0], sizes = [8, 8, 3], strides = [1, 1, 1]} : vector<8x10x3xbf16> to vector<8x8x3xbf16>
    %13 = vector.extract_strided_slice %10 {offsets = [0, 2, 0], sizes = [8, 8, 3], strides = [1, 1, 1]} : vector<8x10x3xbf16> to vector<8x8x3xbf16>
    %14 = tpu.concatenate %11, %12, %13 in 2 : vector<8x8x3xbf16>, vector<8x8x3xbf16>, vector<8x8x3xbf16> -> vector<8x8x9xbf16>
    %15 = vector.shape_cast %14 : vector<8x8x9xbf16> to vector<64x9xbf16>
    %16 = vector.extract_strided_slice %7 {offsets = [0, 0, 0], sizes = [1, 9, 16], strides = [1, 1, 1]} : vector<3x9x16xbf16> to vector<1x9x16xbf16>
    %17 = vector.shape_cast %16 : vector<1x9x16xbf16> to vector<9x16xbf16>
    %cst_17 = arith.constant dense<0.000000e+00> : vector<64x16xf32>
    %18 = tpu.matmul %15, %17, %cst_17 {dimension_numbers = #tpu.dot_dimension_numbers<[1], [0], [0], [1], [0, 0, 1, 1], [], []>} : vector<64x9xbf16>, vector<9x16xbf16>, vector<64x16xf32> -> vector<64x16xf32>
    %19 = arith.addf %9, %18 : vector<64x16xf32>
    %20 = vector.extract_strided_slice %6 {offsets = [1, 0, 0], sizes = [8, 10, 3], strides = [1, 1, 1]} : vector<10x10x3xbf16> to vector<8x10x3xbf16>
    %21 = vector.extract_strided_slice %20 {offsets = [0, 0, 0], sizes = [8, 8, 3], strides = [1, 1, 1]} : vector<8x10x3xbf16> to vector<8x8x3xbf16>
    %22 = vector.extract_strided_slice %20 {offsets = [0, 1, 0], sizes = [8, 8, 3], strides = [1, 1, 1]} : vector<8x10x3xbf16> to vector<8x8x3xbf16>
    %23 = vector.extract_strided_slice %20 {offsets = [0, 2, 0], sizes = [8, 8, 3], strides = [1, 1, 1]} : vector<8x10x3xbf16> to vector<8x8x3xbf16>
    %24 = tpu.concatenate %21, %22, %23 in 2 : vector<8x8x3xbf16>, vector<8x8x3xbf16>, vector<8x8x3xbf16> -> vector<8x8x9xbf16>
    %25 = vector.shape_cast %24 : vector<8x8x9xbf16> to vector<64x9xbf16>
    %26 = vector.extract_strided_slice %7 {offsets = [1, 0, 0], sizes = [1, 9, 16], strides = [1, 1, 1]} : vector<3x9x16xbf16> to vector<1x9x16xbf16>
    %27 = vector.shape_cast %26 : vector<1x9x16xbf16> to vector<9x16xbf16>
    %cst_18 = arith.constant dense<0.000000e+00> : vector<64x16xf32>
    %28 = tpu.matmul %25, %27, %cst_18 {dimension_numbers = #tpu.dot_dimension_numbers<[1], [0], [0], [1], [0, 0, 1, 1], [], []>} : vector<64x9xbf16>, vector<9x16xbf16>, vector<64x16xf32> -> vector<64x16xf32>
    %29 = arith.addf %19, %28 : vector<64x16xf32>
    %30 = vector.extract_strided_slice %6 {offsets = [2, 0, 0], sizes = [8, 10, 3], strides = [1, 1, 1]} : vector<10x10x3xbf16> to vector<8x10x3xbf16>
    %31 = vector.extract_strided_slice %30 {offsets = [0, 0, 0], sizes = [8, 8, 3], strides = [1, 1, 1]} : vector<8x10x3xbf16> to vector<8x8x3xbf16>
    %32 = vector.extract_strided_slice %30 {offsets = [0, 1, 0], sizes = [8, 8, 3], strides = [1, 1, 1]} : vector<8x10x3xbf16> to vector<8x8x3xbf16>
    %33 = vector.extract_strided_slice %30 {offsets = [0, 2, 0], sizes = [8, 8, 3], strides = [1, 1, 1]} : vector<8x10x3xbf16> to vector<8x8x3xbf16>
    %34 = tpu.concatenate %31, %32, %33 in 2 : vector<8x8x3xbf16>, vector<8x8x3xbf16>, vector<8x8x3xbf16> -> vector<8x8x9xbf16>
    %35 = vector.shape_cast %34 : vector<8x8x9xbf16> to vector<64x9xbf16>
    %36 = vector.extract_strided_slice %7 {offsets = [2, 0, 0], sizes = [1, 9, 16], strides = [1, 1, 1]} : vector<3x9x16xbf16> to vector<1x9x16xbf16>
    %37 = vector.shape_cast %36 : vector<1x9x16xbf16> to vector<9x16xbf16>
    %cst_19 = arith.constant dense<0.000000e+00> : vector<64x16xf32>
    %38 = tpu.matmul %35, %37, %cst_19 {dimension_numbers = #tpu.dot_dimension_numbers<[1], [0], [0], [1], [0, 0, 1, 1], [], []>} : vector<64x9xbf16>, vector<9x16xbf16>, vector<64x16xf32> -> vector<64x16xf32>
    %39 = arith.addf %29, %38 : vector<64x16xf32>
    %40 = vector.broadcast %8 : vector<1x16xf32> to vector<64x16xf32>
    %41 = arith.addf %39, %40 : vector<64x16xf32>
    %42 = vector.shape_cast %41 : vector<64x16xf32> to vector<8x8x16xf32>
    %c0_20 = arith.constant 0 : index
    %c0_21 = arith.constant 0 : index
    %c0_22 = arith.constant 0 : index
    %c0_23 = arith.constant 0 : index
    %43 = vector.load %arg4[%c0_20, %c0_21, %c0_22, %c0_23] : memref<1x8x8x16xf32, #tpu.memory_space<vmem>>, vector<1x8x8x16xf32>
    %44 = vector.shape_cast %43 : vector<1x8x8x16xf32> to vector<8x8x16xf32>
    %45 = vector.shape_cast %42 : vector<8x8x16xf32> to vector<1x8x8x16xf32>
    tpu.vector_store %arg4[%c0_20, %c0_21, %c0_22, %c0_23], %45 {strides = array<i32>} : memref<1x8x8x16xf32, #tpu.memory_space<vmem>>, vector<1x8x8x16xf32>,
    return
  }
  func.func @transform_0(%arg0: i32) -> (i32, i32, i32, i32) {
    %c0_i32 = arith.constant 0 : i32
    %c0_i32_0 = arith.constant 0 : i32
    %c0_i32_1 = arith.constant 0 : i32
    %c0_i32_2 = arith.constant 0 : i32
    return %arg0, %c0_i32, %c0_i32_0, %c0_i32_1 : i32, i32, i32, i32
  }
  func.func @transform_1(%arg0: i32) -> (i32, i32, i32) {
    %c0_i32 = arith.constant 0 : i32
    %c0_i32_0 = arith.constant 0 : i32
    %c0_i32_1 = arith.constant 0 : i32
    %c0_i32_2 = arith.constant 0 : i32
    return %c0_i32, %c0_i32_0, %c0_i32_1 : i32, i32, i32
  }
  func.func @transform_2(%arg0: i32) -> (i32, i32) {
    %c0_i32 = arith.constant 0 : i32
    %c0_i32_0 = arith.constant 0 : i32
    %c0_i32_1 = arith.constant 0 : i32
    return %c0_i32, %c0_i32_0 : i32, i32
  }
  func.func @transform_3(%arg0: i32) -> (i32, i32, i32, i32) {
    %c0_i32 = arith.constant 0 : i32
    %c0_i32_0 = arith.constant 0 : i32
    %c0_i32_1 = arith.constant 0 : i32
    %c0_i32_2 = arith.constant 0 : i32
    return %arg0, %c0_i32, %c0_i32_0, %c0_i32_1 : i32, i32, i32, i32
  }
}

</mosaic_0001>

<llo_original>
// kernel: conv3x3.1
$region0: #{conv3x3.1}
  #allocation0 [shape = 'u32[]', space=smem, size = 0x4, offset = 0x4, fixed_abs, tag = 'smem constant byte address 0x4 - core index']
  #allocation1 [shape = 'u32[144,128]{1,0:T(1,128)}', space=vmem, size = 0x12000, scoped, tag = 'internal scratch']
  #allocation2 [shape = 'bf16[10,10,3]{2,1,0:T(8,128)(2,1)}', space=vmem, size = 0xa000, scoped, tag = 'scratch operand']
  %s0 = inlined_call_operand.vmem [shape: f32[2,8,8,3], index: 0, kind: input, shape index: {}]
  %s1 = inlined_call_operand.vmem [shape: bf16[3,9,16], index: 1, kind: input, shape index: {}]
  %s2 = inlined_call_operand.vmem [shape: f32[1,16], index: 2, kind: input, shape index: {}]
  %s3 = inlined_call_operand.hbm [shape: f32[2,8,8,16], index: 3, kind: output, shape index: {}]
  %s4 = sld [smem:[#allocation0]]
  $region45: #{conv3x3.1} parent=0
    _
  %s6 = ssub.s32 1, %s4
  %s7 = scalar_select 0, %s6, %s4
  $region1: #{conv3x3.1} parent=0
    #allocation3 [shape = 'u8[65536]{0}', space=vmem, size = 0x10000, scoped, tag = 'output window, operand 0']
    #allocation4 [shape = 's32[2]{0}', space=sflag, size = 0x8, scoped, tag = 'scoped memory for conv3x3.1']
    %8 = vsyncpa [#allocation4], 0
    %s9 = scalar_lea.sflag [#allocation4], 1
    %10 = vsyncpa %s9, 0
    loop: start=0, step=1, limit=4
    $region2: #{conv3x3.1} parent=1 // loop_pre_header
      _
    $region3: #{conv3x3.1} parent=1 // loop_header
      %s12 = sphi 0, %s16
      %p13 = scmp.ge.s32.totalorder %s12, 4
      %s22 = sphi 0, %s24
      %s25 = sphi 0, %s22
      %s26 = sphi 0, %s25
      %s42 = sphi 0, %s26
      %s46 = sphi 0, %s46
      %s48 = sphi 0, %s46
      %s49 = sphi 0, %s48
      %s63 = sphi 0, %s49
      %s67 = sphi 0, %s67
      %s69 = sphi 0, %s67
      %s70 = sphi 0, %s69
      %s84 = sphi 0, %s70
      %s90 = sphi 0, %s92
      %s93 = sphi 0, %s90
      %s94 = sphi 0, %s93
      %s110 = sphi 0, %s94
    $region4: #{conv3x3.1} parent=1 // loop_header_branch
      %15 = sbr.rel (%p13) target = $region8
    $region5: #{conv3x3.1} parent=1 // loop_body
      %s17 = ssub.s32 %s12, 1
      %s18 = ssub.s32 %s12, 2
      %s19 = sadd.s32 %s12, 1
      %s20 = ssub.s32 %s12, %s19
      %p21 = scmp.eq.s32.totalorder %s20, 0
      %s23 = sadd.s32 %s22, 1
      %s24 = scalar_select %p21, %s22, %s23
      %p27 = pneg %p21
      %p28 = scmp.eq.s32.totalorder %s12, 1
      %p29 = por %p27, %p28
      %p30 = scmp.ne.s32.totalorder %s22, %s25
      %p31 = scmp.eq.s32.totalorder %s12, 0
      %p32 = por %p30, %p31
      %p33 = scmp.ne.s32.totalorder %s22, %s25
      %p34 = scmp.eq.s32.totalorder %s17, 1
      %p35 = por %p33, %p34
      %p36 = scmp.ne.s32.totalorder %s25, %s26
      %p37 = scmp.eq.s32.totalorder %s17, 0
      %p38 = por %p36, %p37
      %p39 = scmp.ne.s32.totalorder %s25, %s26
      %p40 = scmp.eq.s32.totalorder %s18, 1
      %p41 = por %p39, %p40
      %p43 = scmp.ne.s32.totalorder %s26, %s42
      %p44 = scmp.eq.s32.totalorder %s18, 0
      %p45 = por %p43, %p44
      %s47 = sadd.s32 %s46, 1
      %p50 = scmp.eq.s32.totalorder %s12, 1
      %p51 = scmp.ne.s32.totalorder %s46, %s48
      %p52 = scmp.eq.s32.totalorder %s12, 0
      %p53 = por %p51, %p52
      %p54 = scmp.ne.s32.totalorder %s46, %s48
      %p55 = scmp.eq.s32.totalorder %s17, 1
      %p56 = por %p54, %p55
      %p57 = scmp.ne.s32.totalorder %s48, %s49
      %p58 = scmp.eq.s32.totalorder %s17, 0
      %p59 = por %p57, %p58
      %p60 = scmp.ne.s32.totalorder %s48, %s49
      %p61 = scmp.eq.s32.totalorder %s18, 1
      %p62 = por %p60, %p61
      %p64 = scmp.ne.s32.totalorder %s49, %s63
      %p65 = scmp.eq.s32.totalorder %s18, 0
      %p66 = por %p64, %p65
      %s68 = sadd.s32 %s67, 1
      %p71 = scmp.eq.s32.totalorder %s12, 1
      %p72 = scmp.ne.s32.totalorder %s67, %s69
      %p73 = scmp.eq.s32.totalorder %s12, 0
      %p74 = por %p72, %p73
      %p75 = scmp.ne.s32.totalorder %s67, %s69
      %p76 = scmp.eq.s32.totalorder %s17, 1
      %p77 = por %p75, %p76
      %p78 = scmp.ne.s32.totalorder %s69, %s70
      %p79 = scmp.eq.s32.totalorder %s17, 0
      %p80 = por %p78, %p79
      %p81 = scmp.ne.s32.totalorder %s69, %s70
      %p82 = scmp.eq.s32.totalorder %s18, 1
      %p83 = por %p81, %p82
      %p85 = scmp.ne.s32.totalorder %s70, %s84
      %p86 = scmp.eq.s32.totalorder %s18, 0
      %p87 = por %p85, %p86
      %s88 = ssub.s32 %s12, %s19
      %p89 = scmp.eq.s32.totalorder %s88, 0
      %s91 = sadd.s32 %s90, 1
      %s92 = scalar_select %p89, %s90, %s91
      %p95 = pneg %p89
      %p96 = scmp.eq.s32.totalorder %s12, 1
      %p97 = por %p95, %p96
      %p98 = scmp.ne.s32.totalorder %s90, %s93
      %p99 = scmp.eq.s32.totalorder %s12, 0
      %p100 = por %p98, %p99
      %p101 = scmp.ne.s32.totalorder %s90, %s93
      %p102 = scmp.eq.s32.totalorder %s17, 1
      %p103 = por %p101, %p102
      %p104 = scmp.ne.s32.totalorder %s93, %s94
      %p105 = scmp.eq.s32.totalorder %s17, 0
      %p106 = por %p104, %p105
      %p107 = scmp.ne.s32.totalorder %s93, %s94
      %p108 = scmp.eq.s32.totalorder %s18, 1
      %p109 = por %p107, %p108
      %p111 = scmp.ne.s32.totalorder %s94, %s110
      %p112 = scmp.eq.s32.totalorder %s18, 0
      %p113 = por %p111, %p112
      %p114 = scmp.le.s32.totalorder 1, %s12
      %p115 = scmp.lt.s32.totalorder %s12, 3
      %p116 = pnand %p114, %p115
      %p117 = pneg %p116
      // Predicated region
      $region9: #{conv3x3.1} parent=5 // pred_check
        _
      $region10: #{conv3x3.1} parent=5 // pred_check_branch
        %119 = sbr.rel (%p116) target = $region12
      $region11: #{conv3x3.1} parent=5 // pred_region
        %s120 = ssub.s32 %s12, 1
        // Predicated region
        $region13: #{conv3x3.1} parent=11 // pred_check
          %p121 = pneg %p59
        $region14: #{conv3x3.1} parent=11 // pred_check_branch
          %123 = sbr.rel (%p121) target = $region16
        $region15: #{conv3x3.1} parent=11 // pred_region
          _
        $region16: #{conv3x3.1} parent=11 // pred_fallthru
          _
        // Predicated region
        $region17: #{conv3x3.1} parent=11 // pred_check
          %p124 = pneg %p80
        $region18: #{conv3x3.1} parent=11 // pred_check_branch
          %126 = sbr.rel (%p124) target = $region20
        $region19: #{conv3x3.1} parent=11 // pred_region
          _
        $region20: #{conv3x3.1} parent=11 // pred_fallthru
          _
      $region12: #{conv3x3.1} parent=5 // pred_fallthru
        _
      %p127 = scmp.lt.s32.totalorder %s12, 2
      // Predicated region
      $region21: #{conv3x3.1} parent=5 // pred_check
        %p128 = pneg %p127
      $region22: #{conv3x3.1} parent=5 // pred_check_branch
        %130 = sbr.rel (%p128) target = $region24
      $region23: #{conv3x3.1} parent=5 // pred_region
        // Predicated region
        $region25: #{conv3x3.1} parent=23 // pred_check
          %p131 = pneg %p32
        $region26: #{conv3x3.1} parent=23 // pred_check_branch
          %133 = sbr.rel (%p131) target = $region28
        $region27: #{conv3x3.1} parent=23 // pred_region
          %p134 = scmp.lt.s32.totalorder %s12, 1
          %s135 = scalar_select %p134, %s12, 1
          %s136 = smul.addr %s135, 8
          %s137 = smul.addr %s136, 8
          %s138 = scalar_lea.vmem %s0, %s137
        $region28: #{conv3x3.1} parent=23 // pred_fallthru
          _
      $region24: #{conv3x3.1} parent=5 // pred_fallthru
        _
      %p139 = scmp.le.s32.totalorder 1, %s12
      %p140 = scmp.lt.s32.totalorder %s12, 3
      %p141 = pnand %p139, %p140
      %p142 = pneg %p141
      // Predicated region
      $region29: #{conv3x3.1} parent=5 // pred_check
        _
      $region30: #{conv3x3.1} parent=5 // pred_check_branch
        %144 = sbr.rel (%p141) target = $region32
      $region31: #{conv3x3.1} parent=5 // pred_region
        %s145 = ssub.s32 %s12, 1
        %p146 = scmp.lt.s32.totalorder %s17, 1
        %s147 = scalar_select %p146, %s17, 1
        %s148 = smul.addr %s147, 8
        %s149 = smul.addr %s148, 8
        %s150 = scalar_lea.vmem %s0, %s149
        %p151 = pneg %p38
        %p152 = pneg %p35
        %p153 = pneg %p59
        %p154 = pneg %p56
        %p155 = pneg %p80
        %p156 = pneg %p77
        %p157 = pneg %p106
        %p158 = pneg %p103
        %s159 = sand.u32 %s93, 1
        %s160 = scalar_lea.sflag [#allocation4], %s159
        %s161 = sand.u32 %s93, 1
        %s162 = smul.addr %s161, 64
        %s163 = scalar_lea.vmem [#allocation3], %s162
        %p164 = scmp.lt.s32.totalorder %s17, 1
        %s165 = scalar_select %p164, %s17, 1
        %s166 = smul.addr %s165, 8
        %s167 = smul.addr %s166, 8
        %s168 = scalar_lea.vmem %s0, %s167
        %v170 = vld [vmem:[%s168] sm:$0xff]
        %v171 = vld [vmem:[%s168 + $0x8] sm:$0xff]
        %v172 = vld [vmem:[%s168 + $0x10] sm:$0xff]
        %v173 = vld [vmem:[%s168 + $0x18] sm:$0xff]
        %v174 = vld [vmem:[%s168 + $0x20] sm:$0xff]
        %v175 = vld [vmem:[%s168 + $0x28] sm:$0xff]
        %v176 = vld [vmem:[%s168 + $0x30] sm:$0xff]
        %v177 = vld [vmem:[%s168 + $0x38] sm:$0xff]
        %vm178 = vcmask 19456
        %179 = vst.msk [vmem:[#allocation2] sm:$0xf] %vm178, 0
        %vm180 = vcmask 16384
        %181 = vst.msk [vmem:[#allocation2 + $0x4] sm:$0x1] %vm180, 0
        %182 = vst.msk [vmem:[#allocation2 + $0x8] sm:$0xf] %vm178, 0
        %183 = vst.msk [vmem:[#allocation2 + $0xc] sm:$0x1] %vm180, 0
        %184 = vst.msk [vmem:[#allocation2 + $0x10] sm:$0xf] %vm178, 0
        %185 = vst.msk [vmem:[#allocation2 + $0x14] sm:$0x1] %vm180, 0
        %186 = vst.msk [vmem:[#allocation2 + $0x18] sm:$0xf] %vm178, 0
        %187 = vst.msk [vmem:[#allocation2 + $0x1c] sm:$0x1] %vm180, 0
        %188 = vst.msk [vmem:[#allocation2 + $0x20] sm:$0xf] %vm178, 0
        %189 = vst.msk [vmem:[#allocation2 + $0x24] sm:$0x1] %vm180, 0
        %190 = vst.msk [vmem:[#allocation2 + $0x28] sm:$0xf] %vm178, 0
        %191 = vst.msk [vmem:[#allocation2 + $0x2c] sm:$0x1] %vm180, 0
        %192 = vst.msk [vmem:[#allocation2 + $0x30] sm:$0xf] %vm178, 0
        %193 = vst.msk [vmem:[#allocation2 + $0x34] sm:$0x1] %vm180, 0
        %194 = vst.msk [vmem:[#allocation2 + $0x38] sm:$0xf] %vm178, 0
        %195 = vst.msk [vmem:[#allocation2 + $0x3c] sm:$0x1] %vm180, 0
        %196 = vst.msk [vmem:[#allocation2 + $0x40] sm:$0xf] %vm178, 0
        %197 = vst.msk [vmem:[#allocation2 + $0x44] sm:$0x1] %vm180, 0
        %198 = vst.msk [vmem:[#allocation2 + $0x48] sm:$0xf] %vm178, 0
        %199 = vst.msk [vmem:[#allocation2 + $0x4c] sm:$0x1] %vm180, 0
        %v200 = vpack.c.bf16 %v170, %v170
        %v201 = vpack.c.bf16 %v171, %v171
        %v202 = vpack.c.bf16 %v172, %v172
        %v203 = vpack.c.bf16 %v173, %v173
        %v204 = vpack.c.bf16 %v174, %v174
        %v205 = vpack.c.bf16 %v175, %v175
        %v206 = vpack.c.bf16 %v176, %v176
        %v207 = vpack.c.bf16 %v177, %v177
        %v216 = vunpack.c.l.b16 %v200
        %v217 = vunpack.c.l.b16 %v201
        %v218 = vunpack.c.l.b16 %v202
        %v219 = vunpack.c.l.b16 %v203
        %v220 = vunpack.c.l.b16 %v204
        %v221 = vunpack.c.l.b16 %v205
        %v222 = vunpack.c.l.b16 %v206
        %v223 = vunpack.c.l.b16 %v207
        %v224 = vpack.c.b16 %v216, %v216
        %v225 = vpack.c.b16 %v217, %v217
        %v226 = vpack.c.b16 %v218, %v218
        %v227 = vpack.c.b16 %v219, %v219
        %v228 = vpack.c.b16 %v220, %v220
        %v229 = vpack.c.b16 %v221, %v221
        %v230 = vpack.c.b16 %v222, %v222
        %v231 = vpack.c.b16 %v223, %v223
        %v233 = vshrl.u32 %v224, 16
        %v235 = vrot.slane %v233, 7
        %v236 = vshll.u32 %v224, 16
        %v238 = vor.u32 %v235, %v236
        %v239 = vrot.slane %v235, 4
        %v241 = vshrl.u32 %v225, 16
        %v243 = vrot.slane %v241, 7
        %v244 = vshll.u32 %v225, 16
        %v246 = vor.u32 %v243, %v244
        %v247 = vrot.slane %v243, 4
        %v249 = vshrl.u32 %v226, 16
        %v251 = vrot.slane %v249, 7
        %v252 = vshll.u32 %v226, 16
        %v254 = vor.u32 %v251, %v252
        %v255 = vrot.slane %v251, 4
        %v257 = vshrl.u32 %v227, 16
        %v259 = vrot.slane %v257, 7
        %v260 = vshll.u32 %v227, 16
        %v262 = vor.u32 %v259, %v260
        %v263 = vrot.slane %v259, 4
        %v265 = vshrl.u32 %v228, 16
        %v267 = vrot.slane %v265, 7
        %v268 = vshll.u32 %v228, 16
        %v270 = vor.u32 %v267, %v268
        %v271 = vrot.slane %v267, 4
        %v273 = vshrl.u32 %v229, 16
        %v275 = vrot.slane %v273, 7
        %v276 = vshll.u32 %v229, 16
        %v278 = vor.u32 %v275, %v276
        %v279 = vrot.slane %v275, 4
        %v281 = vshrl.u32 %v230, 16
        %v283 = vrot.slane %v281, 7
        %v284 = vshll.u32 %v230, 16
        %v286 = vor.u32 %v283, %v284
        %v287 = vrot.slane %v283, 4
        %v289 = vshrl.u32 %v231, 16
        %v291 = vrot.slane %v289, 7
        %v292 = vshll.u32 %v231, 16
        %v294 = vor.u32 %v291, %v292
        %v295 = vrot.slane %v291, 4
        %s312 = scalar_lea.vmem [#allocation2], 8
        %vm313 = vcmask 19456
        %vm314 = vsmask.f32 7938
        %vm315 = vmand %vm313, %vm314
        %v316 = vld [vmem:[%s312] sm:$0xf]
        %v317 = vsel %vm315, %v238, %v316
        %318 = vst [vmem:[%s312] sm:$0xf] %v317
        %vm319 = vcmask 16384
        %vm320 = vsmask.f32 256
        %vm321 = vmand %vm319, %vm320
        %v322 = vld [vmem:[%s312 + $0x4] sm:$0x1]
        %v323 = vsel %vm321, %v239, %v322
        %324 = vst [vmem:[%s312 + $0x4] sm:$0x1] %v323
        %v325 = vld [vmem:[%s312 + $0x8] sm:$0xf]
        %v326 = vsel %vm315, %v246, %v325
        %327 = vst [vmem:[%s312 + $0x8] sm:$0xf] %v326
        %v328 = vld [vmem:[%s312 + $0xc] sm:$0x1]
        %v329 = vsel %vm321, %v247, %v328
        %330 = vst [vmem:[%s312 + $0xc] sm:$0x1] %v329
        %v331 = vld [vmem:[%s312 + $0x10] sm:$0xf]
        %v332 = vsel %vm315, %v254, %v331
        %333 = vst [vmem:[%s312 + $0x10] sm:$0xf] %v332
        %v334 = vld [vmem:[%s312 + $0x14] sm:$0x1]
        %v335 = vsel %vm321, %v255, %v334
        %336 = vst [vmem:[%s312 + $0x14] sm:$0x1] %v335
        %v337 = vld [vmem:[%s312 + $0x18] sm:$0xf]
        %v338 = vsel %vm315, %v262, %v337
        %339 = vst [vmem:[%s312 + $0x18] sm:$0xf] %v338
        %v340 = vld [vmem:[%s312 + $0x1c] sm:$0x1]
        %v341 = vsel %vm321, %v263, %v340
        %342 = vst [vmem:[%s312 + $0x1c] sm:$0x1] %v341
        %v343 = vld [vmem:[%s312 + $0x20] sm:$0xf]
        %v344 = vsel %vm315, %v270, %v343
        %345 = vst [vmem:[%s312 + $0x20] sm:$0xf] %v344
        %v346 = vld [vmem:[%s312 + $0x24] sm:$0x1]
        %v347 = vsel %vm321, %v271, %v346
        %348 = vst [vmem:[%s312 + $0x24] sm:$0x1] %v347
        %v349 = vld [vmem:[%s312 + $0x28] sm:$0xf]
        %v350 = vsel %vm315, %v278, %v349
        %351 = vst [vmem:[%s312 + $0x28] sm:$0xf] %v350
        %v352 = vld [vmem:[%s312 + $0x2c] sm:$0x1]
        %v353 = vsel %vm321, %v279, %v352
        %354 = vst [vmem:[%s312 + $0x2c] sm:$0x1] %v353
        %v355 = vld [vmem:[%s312 + $0x30] sm:$0xf]
        %v356 = vsel %vm315, %v286, %v355
        %357 = vst [vmem:[%s312 + $0x30] sm:$0xf] %v356
        %v358 = vld [vmem:[%s312 + $0x34] sm:$0x1]
        %v359 = vsel %vm321, %v287, %v358
        %360 = vst [vmem:[%s312 + $0x34] sm:$0x1] %v359
        %v361 = vld [vmem:[%s312 + $0x38] sm:$0xf]
        %v362 = vsel %vm315, %v294, %v361
        %363 = vst [vmem:[%s312 + $0x38] sm:$0xf] %v362
        %v364 = vld [vmem:[%s312 + $0x3c] sm:$0x1]
        %v365 = vsel %vm321, %v295, %v364
        %366 = vst [vmem:[%s312 + $0x3c] sm:$0x1] %v365
        %v367 = vld [vmem:[#allocation2] sm:$0xf]
        %v368 = vld [vmem:[#allocation2 + $0x4] sm:$0x1]
        %v369 = vld [vmem:[#allocation2 + $0x8] sm:$0xf]
        %v370 = vld [vmem:[#allocation2 + $0xc] sm:$0x1]
        %v371 = vld [vmem:[#allocation2 + $0x10] sm:$0xf]
        %v372 = vld [vmem:[#allocation2 + $0x14] sm:$0x1]
        %v373 = vld [vmem:[#allocation2 + $0x18] sm:$0xf]
        %v374 = vld [vmem:[#allocation2 + $0x1c] sm:$0x1]
        %v375 = vld [vmem:[#allocation2 + $0x20] sm:$0xf]
        %v376 = vld [vmem:[#allocation2 + $0x24] sm:$0x1]
        %v377 = vld [vmem:[#allocation2 + $0x28] sm:$0xf]
        %v378 = vld [vmem:[#allocation2 + $0x2c] sm:$0x1]
        %v379 = vld [vmem:[#allocation2 + $0x30] sm:$0xf]
        %v380 = vld [vmem:[#allocation2 + $0x34] sm:$0x1]
        %v381 = vld [vmem:[#allocation2 + $0x38] sm:$0xf]
        %v382 = vld [vmem:[#allocation2 + $0x3c] sm:$0x1]
        %v383 = vld [vmem:[#allocation2 + $0x40] sm:$0xf]
        %v384 = vld [vmem:[#allocation2 + $0x44] sm:$0x1]
        %v385 = vld [vmem:[#allocation2 + $0x48] sm:$0xf]
        %v386 = vld [vmem:[#allocation2 + $0x4c] sm:$0x1]
        %v387 = vld [vmem:[%s1] sm:$0xf]
        %v388 = vld [vmem:[%s1 + $0x4] sm:$0x1]
        %v389 = vld [vmem:[%s1 + $0x8] sm:$0xf]
        %v390 = vld [vmem:[%s1 + $0xc] sm:$0x1]
        %v391 = vld [vmem:[%s1 + $0x10] sm:$0xf]
        %v392 = vld [vmem:[%s1 + $0x14] sm:$0x1]
        %v393 = vld [vmem:[%s2] sm:$0x1]
        %v410 = vunpack.c.l.b16 %v367
        %v411 = vunpack.c.l.b16 %v368
        %v412 = vunpack.c.l.b16 %v369
        %v413 = vunpack.c.l.b16 %v370
        %v414 = vunpack.c.l.b16 %v371
        %v415 = vunpack.c.l.b16 %v372
        %v416 = vunpack.c.l.b16 %v373
        %v417 = vunpack.c.l.b16 %v374
        %v418 = vunpack.c.l.b16 %v375
        %v419 = vunpack.c.l.b16 %v376
        %v420 = vunpack.c.l.b16 %v377
        %v421 = vunpack.c.l.b16 %v378
        %v422 = vunpack.c.l.b16 %v379
        %v423 = vunpack.c.l.b16 %v380
        %v424 = vunpack.c.l.b16 %v381
        %v425 = vunpack.c.l.b16 %v382
        %v426 = vpack.c.b16 %v411, %v410
        %v427 = vpack.c.b16 %v413, %v412
        %v428 = vpack.c.b16 %v415, %v414
        %v429 = vpack.c.b16 %v417, %v416
        %v430 = vpack.c.b16 %v419, %v418
        %v431 = vpack.c.b16 %v421, %v420
        %v432 = vpack.c.b16 %v423, %v422
        %v433 = vpack.c.b16 %v425, %v424
        %v435 = vshrl.u32 %v426, 16
        %v437 = vshll.u32 %v426, 16
        %v439 = vrot.slane %v437, 1
        %v440 = vor.u32 %v435, %v439
        %v442 = vshrl.u32 %v427, 16
        %v444 = vshll.u32 %v427, 16
        %v446 = vrot.slane %v444, 1
        %v447 = vor.u32 %v442, %v446
        %v449 = vshrl.u32 %v428, 16
        %v451 = vshll.u32 %v428, 16
        %v453 = vrot.slane %v451, 1
        %v454 = vor.u32 %v449, %v453
        %v456 = vshrl.u32 %v429, 16
        %v458 = vshll.u32 %v429, 16
        %v460 = vrot.slane %v458, 1
        %v461 = vor.u32 %v456, %v460
        %v463 = vshrl.u32 %v430, 16
        %v465 = vshll.u32 %v430, 16
        %v467 = vrot.slane %v465, 1
        %v468 = vor.u32 %v463, %v467
        %v470 = vshrl.u32 %v431, 16
        %v472 = vshll.u32 %v431, 16
        %v474 = vrot.slane %v472, 1
        %v475 = vor.u32 %v470, %v474
        %v477 = vshrl.u32 %v432, 16
        %v479 = vshll.u32 %v432, 16
        %v481 = vrot.slane %v479, 1
        %v482 = vor.u32 %v477, %v481
        %v484 = vshrl.u32 %v433, 16
        %v486 = vshll.u32 %v433, 16
        %v488 = vrot.slane %v486, 1
        %v489 = vor.u32 %v484, %v488
        %490 = vrot.lane.b32.xlu0 %v440, 3
        %v491 = vpop.permute.xlu0 %490
        %492 = vrot.lane.b32.xlu0 %v447, 3
        %v493 = vpop.permute.xlu0 %492
        %494 = vrot.lane.b32.xlu0 %v454, 3
        %v495 = vpop.permute.xlu0 %494
        %496 = vrot.lane.b32.xlu0 %v461, 3
        %v497 = vpop.permute.xlu0 %496
        %498 = vrot.lane.b32.xlu0 %v468, 3
        %v499 = vpop.permute.xlu0 %498
        %500 = vrot.lane.b32.xlu0 %v475, 3
        %v501 = vpop.permute.xlu0 %500
        %502 = vrot.lane.b32.xlu0 %v482, 3
        %v503 = vpop.permute.xlu0 %502
        %504 = vrot.lane.b32.xlu0 %v489, 3
        %v505 = vpop.permute.xlu0 %504
        %v506 = vrot.slane %v426, 1
        %v507 = vrot.slane %v427, 1
        %v508 = vrot.slane %v428, 1
        %v509 = vrot.slane %v429, 1
        %v510 = vrot.slane %v430, 1
        %v511 = vrot.slane %v431, 1
        %v512 = vrot.slane %v432, 1
        %v513 = vrot.slane %v433, 1
        %514 = vrot.lane.b32.xlu0 %v506, 6
        %v515 = vpop.permute.xlu0 %514
        %516 = vrot.lane.b32.xlu0 %v507, 6
        %v517 = vpop.permute.xlu0 %516
        %518 = vrot.lane.b32.xlu0 %v508, 6
        %v519 = vpop.permute.xlu0 %518
        %520 = vrot.lane.b32.xlu0 %v509, 6
        %v521 = vpop.permute.xlu0 %520
        %522 = vrot.lane.b32.xlu0 %v510, 6
        %v523 = vpop.permute.xlu0 %522
        %524 = vrot.lane.b32.xlu0 %v511, 6
        %v525 = vpop.permute.xlu0 %524
        %526 = vrot.lane.b32.xlu0 %v512, 6
        %v527 = vpop.permute.xlu0 %526
        %528 = vrot.lane.b32.xlu0 %v513, 6
        %v529 = vpop.permute.xlu0 %528
        %vm530 = vcmask 23552
        %v533 = vsel %vm530, %v367, %v491
        %v536 = vsel %vm530, %v369, %v493
        %v539 = vsel %vm530, %v371, %v495
        %v542 = vsel %vm530, %v373, %v497
        %v545 = vsel %vm530, %v375, %v499
        %v548 = vsel %vm530, %v377, %v501
        %v551 = vsel %vm530, %v379, %v503
        %v554 = vsel %vm530, %v381, %v505
        %vm555 = vcmask 48128
        %v557 = vsel %vm555, %v533, %v515
        %v559 = vsel %vm555, %v536, %v517
        %v561 = vsel %vm555, %v539, %v519
        %v563 = vsel %vm555, %v542, %v521
        %v565 = vsel %vm555, %v545, %v523
        %v567 = vsel %vm555, %v548, %v525
        %v569 = vsel %vm555, %v551, %v527
        %v571 = vsel %vm555, %v554, %v529
        %v574 = vunpack.c.l.b16 %v383
        %v575 = vunpack.c.l.b16 %v384
        %v576 = vpack.c.b16 %v575, %v574
        %v578 = vshrl.u32 %v576, 16
        %v580 = vshll.u32 %v576, 16
        %v582 = vrot.slane %v580, 1
        %v583 = vor.u32 %v578, %v582
        %584 = vrot.lane.b32.xlu0 %v583, 3
        %v585 = vpop.permute.xlu0 %584
        %v586 = vrot.slane %v576, 1
        %587 = vrot.lane.b32.xlu0 %v586, 6
        %v588 = vpop.permute.xlu0 %587
        %v591 = vsel %vm530, %v383, %v585
        %v593 = vsel %vm555, %v591, %v588
        %v602 = vunpack.c.l.b16 %v559
        %v603 = vunpack.c.l.b16 %v561
        %v604 = vunpack.c.l.b16 %v563
        %v605 = vunpack.c.l.b16 %v565
        %v606 = vunpack.c.l.b16 %v567
        %v607 = vunpack.c.l.b16 %v569
        %v608 = vunpack.c.l.b16 %v571
        %v609 = vunpack.c.l.b16 %v593
        %v610 = vpack.c.b16 %v603, %v602
        %v611 = vpack.c.b16 %v605, %v604
        %v612 = vpack.c.b16 %v607, %v606
        %v613 = vpack.c.b16 %v609, %v608
        %v616 = vunpack.c.l.b16 %v389
        %v617 = vunpack.c.l.b16 %v390
        %v618 = vpack.c.b16 %v617, %v616
        %vm619 = vcmask 72704
        %v621 = vsel %vm619, %v610, 0
        %v624 = vsel %vm619, %v611, 0
        %v627 = vsel %vm619, %v612, 0
        %v630 = vsel %vm619, %v613, 0
        %vm632 = vcmask 1043456
        %vm633 = vcmask 1044480
        %v634 = vsel %vm632, 4294967295, 65535
        %v635 = vsel %vm633, %v634, 0
        %v637 = vand.u32 %v618, %v635
        %639 = vmatprep.subr.bf16.mxu0 0
        %640 = vmatpush1.bf16.msra.mxu0 %v637
        %641 = vmatprep.subr.bf16.mxu0 0
        %642 = vmatpush1.bf16.msra.mxu0 0
        %643 = vmatprep.subr.bf16.mxu0 0
        %644 = vmatpush1.bf16.msra.mxu0 0
        %645 = vmatprep.subr.bf16.mxu0 0
        %646 = vmatpush1.bf16.msra.mxu0 0
        %647 = vmatprep.subr.bf16.mxu0 0
        %648 = vmatpush1.bf16.msra.mxu0 0
        %649 = vmatprep.subr.bf16.mxu0 0
        %650 = vmatpush1.bf16.msra.mxu0 0
        %651 = vmatprep.subr.bf16.mxu0 0
        %652 = vmatpush1.bf16.msra.mxu0 0
        %653 = vmatprep.subr.bf16.mxu0 0
        %654 = vmatpush1.bf16.msra.mxu0 0
        %655 = vmatprep.subr.bf16.mxu0 0
        %656 = vmatpush1.bf16.msra.mxu0 0
        %657 = vmatprep.subr.bf16.mxu0 0
        %658 = vmatpush1.bf16.msra.mxu0 0
        %659 = vmatprep.subr.bf16.mxu0 0
        %660 = vmatpush1.bf16.msra.mxu0 0
        %661 = vmatprep.subr.bf16.mxu0 0
        %662 = vmatpush1.bf16.msra.mxu0 0
        %663 = vmatprep.subr.bf16.mxu0 0
        %664 = vmatpush1.bf16.msra.mxu0 0
        %665 = vmatprep.subr.bf16.mxu0 0
        %666 = vmatpush1.bf16.msra.mxu0 0
        %667 = vmatprep.subr.bf16.mxu0 0
        %668 = vmatpush1.bf16.msra.mxu0 0
        %669 = vmatprep.subr.bf16.mxu0 0
        %670 = vmatpush1.bf16.msra.mxu0 0
        %671 = vmatprep.mubr.bf16.mxu0 0
        %672 = vmatmul.mubr.bf16.gmra.mrb[0].mxu0 %v621
        %v673 = vpop.f32.mrb[0].mxu0
        %v674 = vadd.f32 0.0, %v673
        %v675 = vpop.f32.mrb[0].mxu0
        %v676 = vpop.f32.mrb[0].mxu0
        %v677 = vadd.f32 0.0, %v676
        %v678 = vpop.f32.mrb[0].mxu0
        %679 = vmatprep.mubr.bf16.mxu0 0
        %680 = vmatmul.mubr.bf16.gmra.mrb[0].mxu0 %v624
        %v681 = vpop.f32.mrb[0].mxu0
        %v682 = vadd.f32 0.0, %v681
        %v683 = vpop.f32.mrb[0].mxu0
        %v684 = vpop.f32.mrb[0].mxu0
        %v685 = vadd.f32 0.0, %v684
        %v686 = vpop.f32.mrb[0].mxu0
        %687 = vmatprep.mubr.bf16.mxu0 0
        %688 = vmatmul.mubr.bf16.gmra.mrb[0].mxu0 %v627
        %v689 = vpop.f32.mrb[0].mxu0
        %v690 = vadd.f32 0.0, %v689
        %v691 = vpop.f32.mrb[0].mxu0
        %v692 = vpop.f32.mrb[0].mxu0
        %v693 = vadd.f32 0.0, %v692
        %v694 = vpop.f32.mrb[0].mxu0
        %695 = vmatprep.mubr.bf16.mxu0 0
        %696 = vmatmul.mubr.bf16.gmra.mrb[0].mxu0 %v630
        %v697 = vpop.f32.mrb[0].mxu0
        %v698 = vadd.f32 0.0, %v697
        %v699 = vpop.f32.mrb[0].mxu0
        %v700 = vpop.f32.mrb[0].mxu0
        %v701 = vadd.f32 0.0, %v700
        %v702 = vpop.f32.mrb[0].mxu0
        %703 = vdwg.mxu0
        %v705 = vunpack.c.l.b16 %v557
        %v706 = vpack.c.b16 %v602, %v705
        %v707 = vpack.c.b16 %v604, %v603
        %v708 = vpack.c.b16 %v606, %v605
        %v709 = vpack.c.b16 %v608, %v607
        %v712 = vunpack.c.l.b16 %v387
        %v713 = vunpack.c.l.b16 %v388
        %v714 = vpack.c.b16 %v713, %v712
        %v716 = vsel %vm619, %v706, 0
        %v719 = vsel %vm619, %v707, 0
        %v722 = vsel %vm619, %v708, 0
        %v725 = vsel %vm619, %v709, 0
        %v728 = vand.u32 %v714, %v635
        %730 = vmatprep.subr.bf16.mxu0 0
        %731 = vmatpush1.bf16.msra.mxu0 %v728
        %732 = vmatprep.subr.bf16.mxu0 0
        %733 = vmatpush1.bf16.msra.mxu0 0
        %734 = vmatprep.subr.bf16.mxu0 0
        %735 = vmatpush1.bf16.msra.mxu0 0
        %736 = vmatprep.subr.bf16.mxu0 0
        %737 = vmatpush1.bf16.msra.mxu0 0
        %738 = vmatprep.subr.bf16.mxu0 0
        %739 = vmatpush1.bf16.msra.mxu0 0
        %740 = vmatprep.subr.bf16.mxu0 0
        %741 = vmatpush1.bf16.msra.mxu0 0
        %742 = vmatprep.subr.bf16.mxu0 0
        %743 = vmatpush1.bf16.msra.mxu0 0
        %744 = vmatprep.subr.bf16.mxu0 0
        %745 = vmatpush1.bf16.msra.mxu0 0
        %746 = vmatprep.subr.bf16.mxu0 0
        %747 = vmatpush1.bf16.msra.mxu0 0
        %748 = vmatprep.subr.bf16.mxu0 0
        %749 = vmatpush1.bf16.msra.mxu0 0
        %750 = vmatprep.subr.bf16.mxu0 0
        %751 = vmatpush1.bf16.msra.mxu0 0
        %752 = vmatprep.subr.bf16.mxu0 0
        %753 = vmatpush1.bf16.msra.mxu0 0
        %754 = vmatprep.subr.bf16.mxu0 0
        %755 = vmatpush1.bf16.msra.mxu0 0
        %756 = vmatprep.subr.bf16.mxu0 0
        %757 = vmatpush1.bf16.msra.mxu0 0
        %758 = vmatprep.subr.bf16.mxu0 0
        %759 = vmatpush1.bf16.msra.mxu0 0
        %760 = vmatprep.subr.bf16.mxu0 0
        %761 = vmatpush1.bf16.msra.mxu0 0
        %762 = vmatprep.mubr.bf16.mxu0 0
        %763 = vmatmul.mubr.bf16.gmra.mrb[0].mxu0 %v716
        %v764 = vpop.f32.mrb[0].mxu0
        %v765 = vadd.f32 %v674, %v764
        %v766 = vpop.f32.mrb[0].mxu0
        %v767 = vpop.f32.mrb[0].mxu0
        %v768 = vadd.f32 %v677, %v767
        %v769 = vpop.f32.mrb[0].mxu0
        %770 = vmatprep.mubr.bf16.mxu0 0
        %771 = vmatmul.mubr.bf16.gmra.mrb[0].mxu0 %v719
        %v772 = vpop.f32.mrb[0].mxu0
        %v773 = vadd.f32 %v682, %v772
        %v774 = vpop.f32.mrb[0].mxu0
        %v775 = vpop.f32.mrb[0].mxu0
        %v776 = vadd.f32 %v685, %v775
        %v777 = vpop.f32.mrb[0].mxu0
        %778 = vmatprep.mubr.bf16.mxu0 0
        %779 = vmatmul.mubr.bf16.gmra.mrb[0].mxu0 %v722
        %v780 = vpop.f32.mrb[0].mxu0
        %v781 = vadd.f32 %v690, %v780
        %v782 = vpop.f32.mrb[0].mxu0
        %v783 = vpop.f32.mrb[0].mxu0
        %v784 = vadd.f32 %v693, %v783
        %v785 = vpop.f32.mrb[0].mxu0
        %786 = vmatprep.mubr.bf16.mxu0 0
        %787 = vmatmul.mubr.bf16.gmra.mrb[0].mxu0 %v725
        %v788 = vpop.f32.mrb[0].mxu0
        %v789 = vadd.f32 %v698, %v788
        %v790 = vpop.f32.mrb[0].mxu0
        %v791 = vpop.f32.mrb[0].mxu0
        %v792 = vadd.f32 %v701, %v791
        %v793 = vpop.f32.mrb[0].mxu0
        %794 = vdwg.mxu0
        %v797 = vunpack.c.l.b16 %v385
        %v798 = vunpack.c.l.b16 %v386
        %v799 = vpack.c.b16 %v798, %v797
        %v801 = vshrl.u32 %v799, 16
        %v803 = vshll.u32 %v799, 16
        %v805 = vrot.slane %v803, 1
        %v806 = vor.u32 %v801, %v805
        %807 = vrot.lane.b32.xlu0 %v806, 3
        %v808 = vpop.permute.xlu0 %807
        %v809 = vrot.slane %v799, 1
        %810 = vrot.lane.b32.xlu0 %v809, 6
        %v811 = vpop.permute.xlu0 %810
        %v814 = vsel %vm530, %v385, %v808
        %v816 = vsel %vm555, %v814, %v811
        %v818 = vunpack.c.l.b16 %v816
        %v819 = vpack.c.b16 %v818, %v609
        %v822 = vunpack.c.l.b16 %v391
        %v823 = vunpack.c.l.b16 %v392
        %v824 = vpack.c.b16 %v823, %v822
        %v826 = vsel %vm619, %v819, 0
        %v829 = vand.u32 %v824, %v635
        %831 = vmatprep.subr.bf16.mxu0 0
        %832 = vmatpush1.bf16.msra.mxu0 %v829
        %833 = vmatprep.subr.bf16.mxu0 0
        %834 = vmatpush1.bf16.msra.mxu0 0
        %835 = vmatprep.subr.bf16.mxu0 0
        %836 = vmatpush1.bf16.msra.mxu0 0
        %837 = vmatprep.subr.bf16.mxu0 0
        %838 = vmatpush1.bf16.msra.mxu0 0
        %839 = vmatprep.subr.bf16.mxu0 0
        %840 = vmatpush1.bf16.msra.mxu0 0
        %841 = vmatprep.subr.bf16.mxu0 0
        %842 = vmatpush1.bf16.msra.mxu0 0
        %843 = vmatprep.subr.bf16.mxu0 0
        %844 = vmatpush1.bf16.msra.mxu0 0
        %845 = vmatprep.subr.bf16.mxu0 0
        %846 = vmatpush1.bf16.msra.mxu0 0
        %847 = vmatprep.subr.bf16.mxu0 0
        %848 = vmatpush1.bf16.msra.mxu0 0
        %849 = vmatprep.subr.bf16.mxu0 0
        %850 = vmatpush1.bf16.msra.mxu0 0
        %851 = vmatprep.subr.bf16.mxu0 0
        %852 = vmatpush1.bf16.msra.mxu0 0
        %853 = vmatprep.subr.bf16.mxu0 0
        %854 = vmatpush1.bf16.msra.mxu0 0
        %855 = vmatprep.subr.bf16.mxu0 0
        %856 = vmatpush1.bf16.msra.mxu0 0
        %857 = vmatprep.subr.bf16.mxu0 0
        %858 = vmatpush1.bf16.msra.mxu0 0
        %859 = vmatprep.subr.bf16.mxu0 0
        %860 = vmatpush1.bf16.msra.mxu0 0
        %861 = vmatprep.subr.bf16.mxu0 0
        %862 = vmatpush1.bf16.msra.mxu0 0
        %863 = vmatprep.mubr.bf16.mxu0 0
        %864 = vmatmul.mubr.bf16.gmra.mrb[0].mxu0 %v719
        %v865 = vpop.f32.mrb[0].mxu0
        %v866 = vadd.f32 0.0, %v865
        %v867 = vpop.f32.mrb[0].mxu0
        %v868 = vpop.f32.mrb[0].mxu0
        %v869 = vadd.f32 0.0, %v868
        %v870 = vpop.f32.mrb[0].mxu0
        %871 = vmatprep.mubr.bf16.mxu0 0
        %872 = vmatmul.mubr.bf16.gmra.mrb[0].mxu0 %v722
        %v873 = vpop.f32.mrb[0].mxu0
        %v874 = vadd.f32 0.0, %v873
        %v875 = vpop.f32.mrb[0].mxu0
        %v876 = vpop.f32.mrb[0].mxu0
        %v877 = vadd.f32 0.0, %v876
        %v878 = vpop.f32.mrb[0].mxu0
        %879 = vmatprep.mubr.bf16.mxu0 0
        %880 = vmatmul.mubr.bf16.gmra.mrb[0].mxu0 %v725
        %v881 = vpop.f32.mrb[0].mxu0
        %v882 = vadd.f32 0.0, %v881
        %v883 = vpop.f32.mrb[0].mxu0
        %v884 = vpop.f32.mrb[0].mxu0
        %v885 = vadd.f32 0.0, %v884
        %v886 = vpop.f32.mrb[0].mxu0
        %887 = vmatprep.mubr.bf16.mxu0 0
        %888 = vmatmul.mubr.bf16.gmra.mrb[0].mxu0 %v826
        %v889 = vpop.f32.mrb[0].mxu0
        %v890 = vadd.f32 0.0, %v889
        %v891 = vpop.f32.mrb[0].mxu0
        %v892 = vpop.f32.mrb[0].mxu0
        %v893 = vadd.f32 0.0, %v892
        %v894 = vpop.f32.mrb[0].mxu0
        %895 = vdwg.mxu0
        %v896 = vadd.f32 %v765, %v866
        %v897 = vadd.f32 %v768, %v869
        %v898 = vadd.f32 %v773, %v874
        %v899 = vadd.f32 %v776, %v877
        %v900 = vadd.f32 %v781, %v882
        %v901 = vadd.f32 %v784, %v885
        %v902 = vadd.f32 %v789, %v890
        %v903 = vadd.f32 %v792, %v893
        %v905 = vlaneseq
        %v906 = vshrl.u32 %v905, 7
        %v907 = vsub.s32 0, %v906
        %v908 = vrot.slane %v393, %v907
        %v910 = vadd.f32 %v896, %v908
        %v911 = vadd.f32 %v897, %v908
        %v912 = vadd.f32 %v898, %v908
        %v913 = vadd.f32 %v899, %v908
        %v914 = vadd.f32 %v900, %v908
        %v915 = vadd.f32 %v901, %v908
        %v916 = vadd.f32 %v902, %v908
        %v917 = vadd.f32 %v903, %v908
        %vm918 = vcmask 130048
        %919 = vst.msk [vmem:[%s163] sm:$0xff] %vm918, %v910
        %920 = vst.msk [vmem:[%s163 + $0x8] sm:$0xff] %vm918, %v911
        %921 = vst.msk [vmem:[%s163 + $0x10] sm:$0xff] %vm918, %v912
        %922 = vst.msk [vmem:[%s163 + $0x18] sm:$0xff] %vm918, %v913
        %923 = vst.msk [vmem:[%s163 + $0x20] sm:$0xff] %vm918, %v914
        %924 = vst.msk [vmem:[%s163 + $0x28] sm:$0xff] %vm918, %v915
        %925 = vst.msk [vmem:[%s163 + $0x30] sm:$0xff] %vm918, %v916
        %926 = vst.msk [vmem:[%s163 + $0x38] sm:$0xff] %vm918, %v917
        %s927 = sand.u32 %s93, 1
        %s928 = scalar_lea.sflag [#allocation4], %s927
        %s929 = sand.u32 %s93, 1
        %s930 = smul.addr %s929, 64
        %s931 = scalar_lea.vmem [#allocation3], %s930
        // Predicated region
        $region33: #{conv3x3.1} parent=31 // pred_check
          %p932 = pneg %p103
        $region34: #{conv3x3.1} parent=31 // pred_check_branch
          %934 = sbr.rel (%p932) target = $region36
        $region35: #{conv3x3.1} parent=31 // pred_region
          %s936 = ssub.s32 1024, 1024
          %937 = vsyncadd %s928, %s936
          %s938 = smul.addr %s17, 8
          %s939 = smul.addr %s938, 128
          %s940 = scalar_lea.hbm %s3, %s939
          %s941 = sshll.u32 %s931, 4
          %s942 = int_to_ptr.vmem [resolvable:$true] %s941
          %947 = dma.vmem_to_hbm [thread:$0]  %s942, 1024, %s940, %s928, 128, 128, 8
        $region36: #{conv3x3.1} parent=31 // pred_fallthru
          _
      $region32: #{conv3x3.1} parent=5 // pred_fallthru
        _
      %p948 = scmp.le.s32.totalorder 2, %s12
      // Predicated region
      $region37: #{conv3x3.1} parent=5 // pred_check
        %p949 = pneg %p948
      $region38: #{conv3x3.1} parent=5 // pred_check_branch
        %951 = sbr.rel (%p949) target = $region40
      $region39: #{conv3x3.1} parent=5 // pred_region
        %s952 = ssub.s32 %s12, 2
        // Predicated region
        $region41: #{conv3x3.1} parent=39 // pred_check
          %p953 = pneg %p109
        $region42: #{conv3x3.1} parent=39 // pred_check_branch
          %955 = sbr.rel (%p953) target = $region44
        $region43: #{conv3x3.1} parent=39 // pred_region
          %s956 = sand.u32 %s94, 1
          %s957 = scalar_lea.sflag [#allocation4], %s956
          %s958 = sand.u32 %s94, 1
          %s959 = smul.addr %s958, 64
          %s960 = scalar_lea.vmem [#allocation3], %s959
          %961 = dma.done %s957, 1024
        $region44: #{conv3x3.1} parent=39 // pred_fallthru
          _
      $region40: #{conv3x3.1} parent=5 // pred_fallthru
        _
    $region6: #{conv3x3.1} parent=1 // loop_footer
      %s16 = sadd.s32 1, %s12
    $region7: #{conv3x3.1} parent=1 // loop_footer_branch
      %11 = sbr.rel target = $region3
    $region8: #{conv3x3.1} parent=1 // loop_exit
      _
    %962 = vsyncpa [#allocation4], 1
    %s963 = scalar_lea.sflag [#allocation4], 1
    %964 = vsyncpa %s963, 1

</llo_original>
